<compile_context>
chip_gen: v5e
topology: v5e:2x2
jax: 0.10.0
libtpu: 0.0.40
codegen_flags: <defaults>
</compile_context>

<pallas_src>
import jax
import jax.numpy as jnp
from jax.experimental import pallas as pl
from jax.experimental.pallas import tpu as pltpu

H1 = 128  # first hidden width
H2 = 256  # second hidden width


def generator_kernel(x_ref, w1_ref, b1_ref, w2_ref, b2_ref, w3_ref, b3_ref,
                     o_ref):
    # Layer 1: bf16 matmul on the MXU, f32 accumulation; bias + ReLU in f32.
    h1 = jnp.dot(x_ref[...], w1_ref[...],
                 preferred_element_type=jnp.float32)
    h1 = jnp.maximum(h1 + b1_ref[...], 0.0)
    # Layer 2
    h2 = jnp.dot(h1.astype(jnp.bfloat16), w2_ref[...],
                 preferred_element_type=jnp.float32)
    h2 = jnp.maximum(h2 + b2_ref[...], 0.0)
    # Layer 3 + tanh (EUP), store f32 lane-dense tile.
    h3 = jnp.dot(h2.astype(jnp.bfloat16), w3_ref[...],
                 preferred_element_type=jnp.float32)
    o_ref[...] = jnp.tanh(h3 + b3_ref[...]).astype(o_ref.dtype)


def generator_forward(x, params, *, tm=256):
    """x: (B, noise_dim) f32. Returns (B, image_dim) f32."""
    w1, b1 = params["w1"], params["b1"]
    w2, b2 = params["w2"], params["b2"]
    w3, b3 = params["w3"], params["b3"]

    B, noise_dim = x.shape
    image_dim = w3.shape[1]

    # Lane-pad the output feature dim to a multiple of 128 (unmasked stores).
    image_dim_p = pl.cdiv(image_dim, 128) * 128
    if image_dim_p != image_dim:
        pad_n = image_dim_p - image_dim
        w3 = jnp.pad(w3, ((0, 0), (0, pad_n)))
        b3 = jnp.pad(b3, ((0, 0), (0, pad_n)))

    # Batch tile: fill MXU rows at large batch; 8-aligned batch at small sizes.
    tm = min(tm, max(8, ((B + 7) // 8) * 8))
    Bp = pl.cdiv(B, tm) * tm
    if Bp != B:
        x = jnp.pad(x, ((0, Bp - B), (0, 0)))

    # bf16 matmul inputs, f32 biases / accumulation.
    x_bf = x.astype(jnp.bfloat16)
    w1_bf = w1.astype(jnp.bfloat16)
    w2_bf = w2.astype(jnp.bfloat16)
    w3_bf = w3.astype(jnp.bfloat16)

    flops = 2 * Bp * (noise_dim * H1 + H1 * H2 + H2 * image_dim_p)
    bytes_accessed = (
        x_bf.size * 2 + w1_bf.size * 2 + w2_bf.size * 2 + w3_bf.size * 2
        + (b1.size + b2.size + b3.size) * 4 + Bp * image_dim_p * 4)

    out = pl.pallas_call(
        generator_kernel,
        out_shape=jax.ShapeDtypeStruct((Bp, image_dim_p), jnp.float32),
        grid=(Bp // tm,),
        in_specs=[
            pl.BlockSpec((tm, noise_dim), lambda i: (i, 0)),     # x tile (streamed)
            pl.BlockSpec((noise_dim, H1), lambda i: (0, 0)),     # W1 (resident)
            pl.BlockSpec((1, H1), lambda i: (0, 0)),             # b1
            pl.BlockSpec((H1, H2), lambda i: (0, 0)),            # W2
            pl.BlockSpec((1, H2), lambda i: (0, 0)),             # b2
            pl.BlockSpec((H2, image_dim_p), lambda i: (0, 0)),   # W3
            pl.BlockSpec((1, image_dim_p), lambda i: (0, 0)),    # b3
        ],
        out_specs=pl.BlockSpec((tm, image_dim_p), lambda i: (i, 0)),
        compiler_params=pltpu.CompilerParams(
            dimension_semantics=("parallel",)),
        cost_estimate=pl.CostEstimate(
            flops=flops,
            transcendentals=Bp * image_dim_p,
            bytes_accessed=bytes_accessed),
    )(x_bf, w1_bf, b1, w2_bf, b2, w3_bf, b3)

    return out[:B, :image_dim]


def init_params(key, noise_dim, image_dim):
    """Deterministic init mimicking torch.nn.Linear (uniform ±1/sqrt(fan_in)).

    Weights stored as (in_features, out_features) so y = x @ W + b; biases as
    (1, out_features) for clean 2-D broadcasting on TPU.
    """
    dims = [(noise_dim, H1), (H1, H2), (H2, image_dim)]
    params = {}
    keys = jax.random.split(key, 6)
    for i, (fan_in, fan_out) in enumerate(dims):
        bound = 1.0 / jnp.sqrt(fan_in)
        params[f"w{i+1}"] = jax.random.uniform(
            keys[2 * i], (fan_in, fan_out), jnp.float32, -bound, bound)
        params[f"b{i+1}"] = jax.random.uniform(
            keys[2 * i + 1], (1, fan_out), jnp.float32, -bound, bound)
    return params


def reference_forward(x, params):
    """Numerics-matched reference: bf16 matmul inputs, f32 accumulation."""
    bf = jnp.bfloat16
    h1 = jnp.maximum(
        jnp.dot(x.astype(bf), params["w1"].astype(bf),
                preferred_element_type=jnp.float32) + params["b1"], 0.0)
    h2 = jnp.maximum(
        jnp.dot(h1.astype(bf), params["w2"].astype(bf),
                preferred_element_type=jnp.float32) + params["b2"], 0.0)
    return jnp.tanh(
        jnp.dot(h2.astype(bf), params["w3"].astype(bf),
                preferred_element_type=jnp.float32) + params["b3"])


if __name__ == "__main__":
    noise_dim = 32
    image_dim = 64   # e.g. an 8x8 flattened image
    batch = 8

    key = jax.random.PRNGKey(0)
    k_params, k_x = jax.random.split(key)
    params = init_params(k_params, noise_dim, image_dim)
    x = jax.random.normal(k_x, (batch, noise_dim), jnp.float32)

    out = generator_forward(x, params)
    out = jax.block_until_ready(out)

    ref = reference_forward(x, params)
    assert out.shape == (batch, image_dim)
    # bf16 matmul inputs -> loosened tolerance vs the bf16-matched reference.
    assert jnp.allclose(out, ref, atol=1e-2, rtol=1e-2), "mismatch vs reference"

    print("KERNEL_OK")
</pallas_src>

<mosaic_0001>
module attributes {stable_mosaic.version = 11 : i64} {
  func.func @generator_kernel(%arg0: i32, %arg1: memref<8x32xbf16, #tpu.memory_space<vmem>>, %arg2: memref<32x128xbf16, #tpu.memory_space<vmem>>, %arg3: memref<1x128xf32, #tpu.memory_space<vmem>>, %arg4: memref<128x256xbf16, #tpu.memory_space<vmem>>, %arg5: memref<1x256xf32, #tpu.memory_space<vmem>>, %arg6: memref<256x128xbf16, #tpu.memory_space<vmem>>, %arg7: memref<1x128xf32, #tpu.memory_space<vmem>>, %arg8: memref<8x128xf32, #tpu.memory_space<vmem>>) attributes {dimension_semantics = [#tpu.dimension_semantics<parallel>], iteration_bounds = array<i64: 1>, scalar_prefetch = 0 : i64, scratch_operands = 0 : i64, tpu.core_type = #tpu.core_type<tc>, window_params = [{transform_indices = @transform_0, window_bounds = array<i64: 8, 32>}, {pipeline_mode = #tpu.pipeline_mode<synchronous>, transform_indices = @transform_1, window_bounds = array<i64: 32, 128>}, {pipeline_mode = #tpu.pipeline_mode<synchronous>, transform_indices = @transform_2, window_bounds = array<i64: 1, 128>}, {pipeline_mode = #tpu.pipeline_mode<synchronous>, transform_indices = @transform_3, window_bounds = array<i64: 128, 256>}, {pipeline_mode = #tpu.pipeline_mode<synchronous>, transform_indices = @transform_4, window_bounds = array<i64: 1, 256>}, {pipeline_mode = #tpu.pipeline_mode<synchronous>, transform_indices = @transform_5, window_bounds = array<i64: 256, 128>}, {pipeline_mode = #tpu.pipeline_mode<synchronous>, transform_indices = @transform_6, window_bounds = array<i64: 1, 128>}, {transform_indices = @transform_7, window_bounds = array<i64: 8, 128>}]} {
    %c0 = arith.constant 0 : index
    %c0_0 = arith.constant 0 : index
    %0 = vector.load %arg1[%c0, %c0_0] : memref<8x32xbf16, #tpu.memory_space<vmem>>, vector<8x32xbf16>
    %c0_1 = arith.constant 0 : index
    %c0_2 = arith.constant 0 : index
    %1 = vector.load %arg2[%c0_1, %c0_2] : memref<32x128xbf16, #tpu.memory_space<vmem>>, vector<32x128xbf16>
    %cst = arith.constant dense<0.000000e+00> : vector<8x128xf32>
    %2 = tpu.matmul %0, %1, %cst {dimension_numbers = #tpu.dot_dimension_numbers<[1], [0], [0], [1], [0, 0, 1, 1], [], []>} : vector<8x32xbf16>, vector<32x128xbf16>, vector<8x128xf32> -> vector<8x128xf32>
    %c0_3 = arith.constant 0 : index
    %c0_4 = arith.constant 0 : index
    %3 = vector.load %arg3[%c0_3, %c0_4] : memref<1x128xf32, #tpu.memory_space<vmem>>, vector<1x128xf32>
    %4 = vector.broadcast %3 : vector<1x128xf32> to vector<8x128xf32>
    %5 = arith.addf %2, %4 : vector<8x128xf32>
    %cst_5 = arith.constant 0.000000e+00 : f32
    %6 = vector.broadcast %cst_5 : f32 to vector<8x128xf32>
    %7 = arith.maximumf %5, %6 : vector<8x128xf32>
    %8 = arith.truncf %7 : vector<8x128xf32> to vector<8x128xbf16>
    %c0_6 = arith.constant 0 : index
    %c0_7 = arith.constant 0 : index
    %9 = vector.load %arg4[%c0_6, %c0_7] : memref<128x256xbf16, #tpu.memory_space<vmem>>, vector<128x256xbf16>
    %cst_8 = arith.constant dense<0.000000e+00> : vector<8x256xf32>
    %10 = tpu.matmul %8, %9, %cst_8 {dimension_numbers = #tpu.dot_dimension_numbers<[1], [0], [0], [1], [0, 0, 1, 1], [], []>} : vector<8x128xbf16>, vector<128x256xbf16>, vector<8x256xf32> -> vector<8x256xf32>
    %c0_9 = arith.constant 0 : index
    %c0_10 = arith.constant 0 : index
    %11 = vector.load %arg5[%c0_9, %c0_10] : memref<1x256xf32, #tpu.memory_space<vmem>>, vector<1x256xf32>
    %12 = vector.broadcast %11 : vector<1x256xf32> to vector<8x256xf32>
    %13 = arith.addf %10, %12 : vector<8x256xf32>
    %cst_11 = arith.constant 0.000000e+00 : f32
    %14 = vector.broadcast %cst_11 : f32 to vector<8x256xf32>
    %15 = arith.maximumf %13, %14 : vector<8x256xf32>
    %16 = arith.truncf %15 : vector<8x256xf32> to vector<8x256xbf16>
    %c0_12 = arith.constant 0 : index
    %c0_13 = arith.constant 0 : index
    %17 = vector.load %arg6[%c0_12, %c0_13] : memref<256x128xbf16, #tpu.memory_space<vmem>>, vector<256x128xbf16>
    %cst_14 = arith.constant dense<0.000000e+00> : vector<8x128xf32>
    %18 = tpu.matmul %16, %17, %cst_14 {dimension_numbers = #tpu.dot_dimension_numbers<[1], [0], [0], [1], [0, 0, 1, 1], [], []>} : vector<8x256xbf16>, vector<256x128xbf16>, vector<8x128xf32> -> vector<8x128xf32>
    %c0_15 = arith.constant 0 : index
    %c0_16 = arith.constant 0 : index
    %19 = vector.load %arg7[%c0_15, %c0_16] : memref<1x128xf32, #tpu.memory_space<vmem>>, vector<1x128xf32>
    %20 = vector.broadcast %19 : vector<1x128xf32> to vector<8x128xf32>
    %21 = arith.addf %18, %20 : vector<8x128xf32>
    %22 = math.tanh %21 : vector<8x128xf32>
    %c0_17 = arith.constant 0 : index
    %c0_18 = arith.constant 0 : index
    %23 = vector.load %arg8[%c0_17, %c0_18] : memref<8x128xf32, #tpu.memory_space<vmem>>, vector<8x128xf32>
    tpu.vector_store %arg8[%c0_17, %c0_18], %22 {strides = array<i32>} : memref<8x128xf32, #tpu.memory_space<vmem>>, vector<8x128xf32>,
    return
  }
  func.func @transform_0(%arg0: i32) -> (i32, i32) {
    %c0_i32 = arith.constant 0 : i32
    %c0_i32_0 = arith.constant 0 : i32
    return %arg0, %c0_i32 : i32, i32
  }
  func.func @transform_1(%arg0: i32) -> (i32, i32) {
    %c0_i32 = arith.constant 0 : i32
    %c0_i32_0 = arith.constant 0 : i32
    %c0_i32_1 = arith.constant 0 : i32
    return %c0_i32, %c0_i32_0 : i32, i32
  }
  func.func @transform_2(%arg0: i32) -> (i32, i32) {
    %c0_i32 = arith.constant 0 : i32
    %c0_i32_0 = arith.constant 0 : i32
    %c0_i32_1 = arith.constant 0 : i32
    return %c0_i32, %c0_i32_0 : i32, i32
  }
  func.func @transform_3(%arg0: i32) -> (i32, i32) {
    %c0_i32 = arith.constant 0 : i32
    %c0_i32_0 = arith.constant 0 : i32
    %c0_i32_1 = arith.constant 0 : i32
    return %c0_i32, %c0_i32_0 : i32, i32
  }
  func.func @transform_4(%arg0: i32) -> (i32, i32) {
    %c0_i32 = arith.constant 0 : i32
    %c0_i32_0 = arith.constant 0 : i32
    %c0_i32_1 = arith.constant 0 : i32
    return %c0_i32, %c0_i32_0 : i32, i32
  }
  func.func @transform_5(%arg0: i32) -> (i32, i32) {
    %c0_i32 = arith.constant 0 : i32
    %c0_i32_0 = arith.constant 0 : i32
    %c0_i32_1 = arith.constant 0 : i32
    return %c0_i32, %c0_i32_0 : i32, i32
  }
  func.func @transform_6(%arg0: i32) -> (i32, i32) {
    %c0_i32 = arith.constant 0 : i32
    %c0_i32_0 = arith.constant 0 : i32
    %c0_i32_1 = arith.constant 0 : i32
    return %c0_i32, %c0_i32_0 : i32, i32
  }
  func.func @transform_7(%arg0: i32) -> (i32, i32) {
    %c0_i32 = arith.constant 0 : i32
    %c0_i32_0 = arith.constant 0 : i32
    return %arg0, %c0_i32 : i32, i32
  }
}

</mosaic_0001>

<llo_original>
// kernel: tpu_custom_call.1
$region0: #{tpu_custom_call.1}
  #allocation0 [shape = 'u32[]', space=smem, size = 0x4, offset = 0x4, fixed_abs, tag = 'smem constant byte address 0x4 - core index']
  #allocation1 [shape = 'u32[72,128]{1,0:T(1,128)}', space=vmem, size = 0x9000, scoped, tag = 'internal scratch']
  %s0 = inlined_call_operand.hbm [shape: bf16[8,32], index: 0, kind: input, shape index: {}]
  %s1 = inlined_call_operand.hbm [shape: bf16[32,128], index: 1, kind: input, shape index: {}]
  %s2 = inlined_call_operand.vmem [shape: f32[1,128], index: 2, kind: input, shape index: {}]
  %s3 = inlined_call_operand.hbm [shape: bf16[128,256], index: 3, kind: input, shape index: {}]
  %s4 = inlined_call_operand.vmem [shape: f32[1,256], index: 4, kind: input, shape index: {}]
  %s5 = inlined_call_operand.hbm [shape: bf16[256,128], index: 5, kind: input, shape index: {}]
  %s6 = inlined_call_operand.vmem [shape: f32[1,128], index: 6, kind: input, shape index: {}]
  %s7 = inlined_call_operand.hbm [shape: f32[8,128], index: 7, kind: output, shape index: {}]
  %s8 = sld [smem:[#allocation0]]
  $region54: #{tpu_custom_call.1} parent=0
    _
  %s10 = ssub.s32 1, %s8
  %s11 = scalar_select 0, %s10, %s8
  $region1: #{tpu_custom_call.1} parent=0
    #allocation2 [shape = 'u8[2048]{0}', space=vmem, size = 0x800, scoped, tag = 'input window, operand 0, single buffered']
    #allocation3 [shape = 's32[1]{0}', space=sflag, size = 0x4, scoped, tag = 'scoped memory for tpu_custom_call.1']
    #allocation4 [shape = 's32[1]{0}', space=sflag, size = 0x4, scoped, tag = 'scoped memory for tpu_custom_call.1']
    #allocation5 [shape = 'u8[8192]{0}', space=vmem, size = 0x2000, scoped, tag = 'input window, operand 1, single buffered']
    #allocation6 [shape = 's32[1]{0}', space=sflag, size = 0x4, scoped, tag = 'scoped memory for tpu_custom_call.1']
    #allocation7 [shape = 'u8[65536]{0}', space=vmem, size = 0x10000, scoped, tag = 'input window, operand 3, single buffered']
    #allocation8 [shape = 'u8[65536]{0}', space=vmem, size = 0x10000, scoped, tag = 'input window, operand 5, single buffered']
    #allocation9 [shape = 's32[1]{0}', space=sflag, size = 0x4, scoped, tag = 'scoped memory for tpu_custom_call.1']
    #allocation10 [shape = 'u8[4096]{0}', space=vmem, size = 0x1000, scoped, tag = 'output window, operand 0, single buffered']
    %12 = vsyncpa [#allocation3], 0
    %13 = vsyncpa [#allocation6], 0
    %14 = vsyncpa [#allocation9], 0
    %15 = vsyncpa [#allocation4], 0
    // Predicated region
    $region2: #{tpu_custom_call.1} parent=1 // pred_check
      _
    $region3: #{tpu_custom_call.1} parent=1 // pred_check_branch
      %17 = sbr.rel (0) target = $region5
    $region4: #{tpu_custom_call.1} parent=1 // pred_region
      %19 = vsyncadd [#allocation3], 0
      %s21 = sshll.u32 %s0, 4
      %s22 = int_to_ptr.hbm [resolvable:$true] %s21
      %s23 = sshll.u32 [#allocation2], 4
      %s24 = int_to_ptr.vmem [resolvable:$true] %s23
      %26 = dma.hbm_to_vmem [thread:$0]  %s22, 64, %s24, [#allocation3]
    $region5: #{tpu_custom_call.1} parent=1 // pred_fallthru
      _
    // Predicated region
    $region6: #{tpu_custom_call.1} parent=1 // pred_check
      _
    $region7: #{tpu_custom_call.1} parent=1 // pred_check_branch
      %28 = sbr.rel (0) target = $region9
    $region8: #{tpu_custom_call.1} parent=1 // pred_region
      %30 = vsyncadd [#allocation6], 0
      %s31 = sshll.u32 %s1, 4
      %s32 = int_to_ptr.hbm [resolvable:$true] %s31
      %s33 = sshll.u32 [#allocation5], 4
      %s34 = int_to_ptr.vmem [resolvable:$true] %s33
      %39 = dma.hbm_to_vmem [thread:$0]  %s32, 256, %s34, [#allocation6], 64, 64, 4
    $region9: #{tpu_custom_call.1} parent=1 // pred_fallthru
      _
    // Predicated region
    $region10: #{tpu_custom_call.1} parent=1 // pred_check
      _
    $region11: #{tpu_custom_call.1} parent=1 // pred_check_branch
      %41 = sbr.rel (0) target = $region13
    $region12: #{tpu_custom_call.1} parent=1 // pred_region
      _
    $region13: #{tpu_custom_call.1} parent=1 // pred_fallthru
      _
    // Predicated region
    $region14: #{tpu_custom_call.1} parent=1 // pred_check
      _
    $region15: #{tpu_custom_call.1} parent=1 // pred_check_branch
      %43 = sbr.rel (0) target = $region17
    $region16: #{tpu_custom_call.1} parent=1 // pred_region
      %45 = vsyncadd [#allocation6], 0
      %s46 = sshll.u32 %s3, 4
      %s47 = int_to_ptr.hbm [resolvable:$true] %s46
      %s48 = sshll.u32 [#allocation7], 4
      %s49 = int_to_ptr.vmem [resolvable:$true] %s48
      %54 = dma.hbm_to_vmem [thread:$0]  %s47, 2048, %s49, [#allocation6], 128, 128, 8
    $region17: #{tpu_custom_call.1} parent=1 // pred_fallthru
      _
    // Predicated region
    $region18: #{tpu_custom_call.1} parent=1 // pred_check
      _
    $region19: #{tpu_custom_call.1} parent=1 // pred_check_branch
      %56 = sbr.rel (0) target = $region21
    $region20: #{tpu_custom_call.1} parent=1 // pred_region
      _
    $region21: #{tpu_custom_call.1} parent=1 // pred_fallthru
      _
    // Predicated region
    $region22: #{tpu_custom_call.1} parent=1 // pred_check
      _
    $region23: #{tpu_custom_call.1} parent=1 // pred_check_branch
      %58 = sbr.rel (0) target = $region25
    $region24: #{tpu_custom_call.1} parent=1 // pred_region
      %60 = vsyncadd [#allocation9], 0
      %s61 = sshll.u32 %s5, 4
      %s62 = int_to_ptr.hbm [resolvable:$true] %s61
      %s63 = sshll.u32 [#allocation8], 4
      %s64 = int_to_ptr.vmem [resolvable:$true] %s63
      %69 = dma.hbm_to_vmem [thread:$0]  %s62, 2048, %s64, [#allocation9], 64, 64, 4
    $region25: #{tpu_custom_call.1} parent=1 // pred_fallthru
      _
    // Predicated region
    $region26: #{tpu_custom_call.1} parent=1 // pred_check
      _
    $region27: #{tpu_custom_call.1} parent=1 // pred_check_branch
      %71 = sbr.rel (0) target = $region29
    $region28: #{tpu_custom_call.1} parent=1 // pred_region
      _
    $region29: #{tpu_custom_call.1} parent=1 // pred_fallthru
      _
    // Predicated region
    $region30: #{tpu_custom_call.1} parent=1 // pred_check
      _
    $region31: #{tpu_custom_call.1} parent=1 // pred_check_branch
      %73 = sbr.rel (0) target = $region33
    $region32: #{tpu_custom_call.1} parent=1 // pred_region
      %75 = dma.done [#allocation3], 64
    $region33: #{tpu_custom_call.1} parent=1 // pred_fallthru
      _
    // Predicated region
    $region34: #{tpu_custom_call.1} parent=1 // pred_check
      _
    $region35: #{tpu_custom_call.1} parent=1 // pred_check_branch
      %77 = sbr.rel (0) target = $region37
    $region36: #{tpu_custom_call.1} parent=1 // pred_region
      %79 = dma.done [#allocation6], 256
    $region37: #{tpu_custom_call.1} parent=1 // pred_fallthru
      _
    // Predicated region
    $region38: #{tpu_custom_call.1} parent=1 // pred_check
      _
    $region39: #{tpu_custom_call.1} parent=1 // pred_check_branch
      %81 = sbr.rel (0) target = $region41
    $region40: #{tpu_custom_call.1} parent=1 // pred_region
      %83 = dma.done [#allocation6], 2048
    $region41: #{tpu_custom_call.1} parent=1 // pred_fallthru
      _
    // Predicated region
    $region42: #{tpu_custom_call.1} parent=1 // pred_check
      _
    $region43: #{tpu_custom_call.1} parent=1 // pred_check_branch
      %85 = sbr.rel (0) target = $region45
    $region44: #{tpu_custom_call.1} parent=1 // pred_region
      %87 = dma.done [#allocation9], 2048
    $region45: #{tpu_custom_call.1} parent=1 // pred_fallthru
      _
    %v89 = vld [vmem:[#allocation2] sm:$0xf]
    %v90 = vld [vmem:[#allocation5] sm:$0xf]
    %v91 = vld [vmem:[#allocation5 + $0x4] sm:$0xf]
    %v92 = vld [vmem:[#allocation5 + $0x8] sm:$0xf]
    %v93 = vld [vmem:[#allocation5 + $0xc] sm:$0xf]
    %v94 = vld [vmem:[%s2] sm:$0x1]
    %v96 = vperm.slane %v94, 0
    %v102 = vunpack.c.l.b16 %v90
    %v103 = vunpack.c.l.b16 %v91
    %v104 = vunpack.c.l.b16 %v92
    %v105 = vunpack.c.l.b16 %v93
    %v106 = vpack.c.b16 %v103, %v102
    %v107 = vpack.c.b16 %v105, %v104
    %vm110 = vcmask 261120
    %v112 = vsel %vm110, %v89, 0
    %114 = vmatpush.bf16.msra.mxu0 0
    %115 = vmatpush.bf16.msra.mxu0 0
    %116 = vmatpush.bf16.msra.mxu0 0
    %117 = vmatpush.bf16.msra.mxu0 0
    %118 = vmatpush.bf16.msra.mxu0 0
    %119 = vmatpush.bf16.msra.mxu0 0
    %120 = vmatpush.bf16.msra.mxu0 %v107
    %121 = vmatpush.bf16.msra.mxu0 %v106
    %122 = vmatmul.bf16.gmra.mxu0 %v112
    %v123 = vpop.f32.mrf.mxu0
    %v124 = vadd.f32 %v96, %v123
    %v125 = vpop.f32.mrf.mxu0
    %126 = vdwg.mxu0
    %v127 = vmax.f32 %v124, 0.0
    %v128 = vpack.c.bf16 %v127, %v127
    %v129 = vld [vmem:[#allocation7] sm:$0xff]
    %v130 = vld [vmem:[#allocation7 + $0x8] sm:$0xff]
    %v131 = vld [vmem:[#allocation7 + $0x10] sm:$0xff]
    %v132 = vld [vmem:[#allocation7 + $0x18] sm:$0xff]
    %v133 = vld [vmem:[#allocation7 + $0x20] sm:$0xff]
    %v134 = vld [vmem:[#allocation7 + $0x28] sm:$0xff]
    %v135 = vld [vmem:[#allocation7 + $0x30] sm:$0xff]
    %v136 = vld [vmem:[#allocation7 + $0x38] sm:$0xff]
    %v137 = vld [vmem:[#allocation7 + $0x40] sm:$0xff]
    %v138 = vld [vmem:[#allocation7 + $0x48] sm:$0xff]
    %v139 = vld [vmem:[#allocation7 + $0x50] sm:$0xff]
    %v140 = vld [vmem:[#allocation7 + $0x58] sm:$0xff]
    %v141 = vld [vmem:[#allocation7 + $0x60] sm:$0xff]
    %v142 = vld [vmem:[#allocation7 + $0x68] sm:$0xff]
    %v143 = vld [vmem:[#allocation7 + $0x70] sm:$0xff]
    %v144 = vld [vmem:[#allocation7 + $0x78] sm:$0xff]
    %v145 = vld [vmem:[%s4] sm:$0x3]
    %v147 = vperm.slane %v145, 0
    %v148 = vperm.slane %v145, 1
    %v167 = vunpack.c.l.b16 %v129
    %v168 = vunpack.c.h.b16 %v129
    %v169 = vunpack.c.l.b16 %v130
    %v170 = vunpack.c.h.b16 %v130
    %v171 = vunpack.c.l.b16 %v131
    %v172 = vunpack.c.h.b16 %v131
    %v173 = vunpack.c.l.b16 %v132
    %v174 = vunpack.c.h.b16 %v132
    %v175 = vunpack.c.l.b16 %v133
    %v176 = vunpack.c.h.b16 %v133
    %v177 = vunpack.c.l.b16 %v134
    %v178 = vunpack.c.h.b16 %v134
    %v179 = vunpack.c.l.b16 %v135
    %v180 = vunpack.c.h.b16 %v135
    %v181 = vunpack.c.l.b16 %v136
    %v182 = vunpack.c.h.b16 %v136
    %v183 = vunpack.c.l.b16 %v137
    %v184 = vunpack.c.h.b16 %v137
    %v185 = vunpack.c.l.b16 %v138
    %v186 = vunpack.c.h.b16 %v138
    %v187 = vunpack.c.l.b16 %v139
    %v188 = vunpack.c.h.b16 %v139
    %v189 = vunpack.c.l.b16 %v140
    %v190 = vunpack.c.h.b16 %v140
    %v191 = vunpack.c.l.b16 %v141
    %v192 = vunpack.c.h.b16 %v141
    %v193 = vunpack.c.l.b16 %v142
    %v194 = vunpack.c.h.b16 %v142
    %v195 = vunpack.c.l.b16 %v143
    %v196 = vunpack.c.h.b16 %v143
    %v197 = vunpack.c.l.b16 %v144
    %v198 = vunpack.c.h.b16 %v144
    %v199 = vpack.c.b16 %v169, %v167
    %v200 = vpack.c.b16 %v170, %v168
    %v201 = vpack.c.b16 %v173, %v171
    %v202 = vpack.c.b16 %v174, %v172
    %v203 = vpack.c.b16 %v177, %v175
    %v204 = vpack.c.b16 %v178, %v176
    %v205 = vpack.c.b16 %v181, %v179
    %v206 = vpack.c.b16 %v182, %v180
    %v207 = vpack.c.b16 %v185, %v183
    %v208 = vpack.c.b16 %v186, %v184
    %v209 = vpack.c.b16 %v189, %v187
    %v210 = vpack.c.b16 %v190, %v188
    %v211 = vpack.c.b16 %v193, %v191
    %v212 = vpack.c.b16 %v194, %v192
    %v213 = vpack.c.b16 %v197, %v195
    %v214 = vpack.c.b16 %v198, %v196
    %231 = vmatpush.bf16.msra.mxu0 %v213
    %232 = vmatpush.bf16.msra.mxu0 %v211
    %233 = vmatpush.bf16.msra.mxu0 %v209
    %234 = vmatpush.bf16.msra.mxu0 %v207
    %235 = vmatpush.bf16.msra.mxu0 %v205
    %236 = vmatpush.bf16.msra.mxu0 %v203
    %237 = vmatpush.bf16.msra.mxu0 %v201
    %238 = vmatpush.bf16.msra.mxu0 %v199
    %239 = vmatmul.bf16.gmra.mxu0 %v128
    %v240 = vpop.f32.mrf.mxu0
    %v241 = vadd.f32 %v147, %v240
    %v242 = vpop.f32.mrf.mxu0
    %243 = vdwg.mxu0
    %244 = vmatpush.bf16.msra.mxu0 %v214
    %245 = vmatpush.bf16.msra.mxu0 %v212
    %246 = vmatpush.bf16.msra.mxu0 %v210
    %247 = vmatpush.bf16.msra.mxu0 %v208
    %248 = vmatpush.bf16.msra.mxu0 %v206
    %249 = vmatpush.bf16.msra.mxu0 %v204
    %250 = vmatpush.bf16.msra.mxu0 %v202
    %251 = vmatpush.bf16.msra.mxu0 %v200
    %252 = vmatmul.bf16.gmra.mxu0 %v128
    %v253 = vpop.f32.mrf.mxu0
    %v254 = vadd.f32 %v148, %v253
    %v255 = vpop.f32.mrf.mxu0
    %256 = vdwg.mxu0
    %v257 = vmax.f32 %v241, 0.0
    %v258 = vmax.f32 %v254, 0.0
    %v259 = vpack.c.bf16 %v257, %v257
    %v260 = vpack.c.bf16 %v258, %v258
    %v261 = vld [vmem:[#allocation8] sm:$0xf]
    %v262 = vld [vmem:[#allocation8 + $0x4] sm:$0xf]
    %v263 = vld [vmem:[#allocation8 + $0x8] sm:$0xf]
    %v264 = vld [vmem:[#allocation8 + $0xc] sm:$0xf]
    %v265 = vld [vmem:[#allocation8 + $0x10] sm:$0xf]
    %v266 = vld [vmem:[#allocation8 + $0x14] sm:$0xf]
    %v267 = vld [vmem:[#allocation8 + $0x18] sm:$0xf]
    %v268 = vld [vmem:[#allocation8 + $0x1c] sm:$0xf]
    %v269 = vld [vmem:[#allocation8 + $0x20] sm:$0xf]
    %v270 = vld [vmem:[#allocation8 + $0x24] sm:$0xf]
    %v271 = vld [vmem:[#allocation8 + $0x28] sm:$0xf]
    %v272 = vld [vmem:[#allocation8 + $0x2c] sm:$0xf]
    %v273 = vld [vmem:[#allocation8 + $0x30] sm:$0xf]
    %v274 = vld [vmem:[#allocation8 + $0x34] sm:$0xf]
    %v275 = vld [vmem:[#allocation8 + $0x38] sm:$0xf]
    %v276 = vld [vmem:[#allocation8 + $0x3c] sm:$0xf]
    %v277 = vld [vmem:[#allocation8 + $0x40] sm:$0xf]
    %v278 = vld [vmem:[#allocation8 + $0x44] sm:$0xf]
    %v279 = vld [vmem:[#allocation8 + $0x48] sm:$0xf]
    %v280 = vld [vmem:[#allocation8 + $0x4c] sm:$0xf]
    %v281 = vld [vmem:[#allocation8 + $0x50] sm:$0xf]
    %v282 = vld [vmem:[#allocation8 + $0x54] sm:$0xf]
    %v283 = vld [vmem:[#allocation8 + $0x58] sm:$0xf]
    %v284 = vld [vmem:[#allocation8 + $0x5c] sm:$0xf]
    %v285 = vld [vmem:[#allocation8 + $0x60] sm:$0xf]
    %v286 = vld [vmem:[#allocation8 + $0x64] sm:$0xf]
    %v287 = vld [vmem:[#allocation8 + $0x68] sm:$0xf]
    %v288 = vld [vmem:[#allocation8 + $0x6c] sm:$0xf]
    %v289 = vld [vmem:[#allocation8 + $0x70] sm:$0xf]
    %v290 = vld [vmem:[#allocation8 + $0x74] sm:$0xf]
    %v291 = vld [vmem:[#allocation8 + $0x78] sm:$0xf]
    %v292 = vld [vmem:[#allocation8 + $0x7c] sm:$0xf]
    %v293 = vld [vmem:[%s6] sm:$0x1]
    %v295 = vperm.slane %v293, 0
    %v329 = vunpack.c.l.b16 %v261
    %v330 = vunpack.c.l.b16 %v262
    %v331 = vunpack.c.l.b16 %v263
    %v332 = vunpack.c.l.b16 %v264
    %v333 = vunpack.c.l.b16 %v265
    %v334 = vunpack.c.l.b16 %v266
    %v335 = vunpack.c.l.b16 %v267
    %v336 = vunpack.c.l.b16 %v268
    %v337 = vunpack.c.l.b16 %v269
    %v338 = vunpack.c.l.b16 %v270
    %v339 = vunpack.c.l.b16 %v271
    %v340 = vunpack.c.l.b16 %v272
    %v341 = vunpack.c.l.b16 %v273
    %v342 = vunpack.c.l.b16 %v274
    %v343 = vunpack.c.l.b16 %v275
    %v344 = vunpack.c.l.b16 %v276
    %v345 = vunpack.c.l.b16 %v277
    %v346 = vunpack.c.l.b16 %v278
    %v347 = vunpack.c.l.b16 %v279
    %v348 = vunpack.c.l.b16 %v280
    %v349 = vunpack.c.l.b16 %v281
    %v350 = vunpack.c.l.b16 %v282
    %v351 = vunpack.c.l.b16 %v283
    %v352 = vunpack.c.l.b16 %v284
    %v353 = vunpack.c.l.b16 %v285
    %v354 = vunpack.c.l.b16 %v286
    %v355 = vunpack.c.l.b16 %v287
    %v356 = vunpack.c.l.b16 %v288
    %v357 = vunpack.c.l.b16 %v289
    %v358 = vunpack.c.l.b16 %v290
    %v359 = vunpack.c.l.b16 %v291
    %v360 = vunpack.c.l.b16 %v292
    %v361 = vpack.c.b16 %v330, %v329
    %v362 = vpack.c.b16 %v332, %v331
    %v363 = vpack.c.b16 %v334, %v333
    %v364 = vpack.c.b16 %v336, %v335
    %v365 = vpack.c.b16 %v338, %v337
    %v366 = vpack.c.b16 %v340, %v339
    %v367 = vpack.c.b16 %v342, %v341
    %v368 = vpack.c.b16 %v344, %v343
    %v369 = vpack.c.b16 %v346, %v345
    %v370 = vpack.c.b16 %v348, %v347
    %v371 = vpack.c.b16 %v350, %v349
    %v372 = vpack.c.b16 %v352, %v351
    %v373 = vpack.c.b16 %v354, %v353
    %v374 = vpack.c.b16 %v356, %v355
    %v375 = vpack.c.b16 %v358, %v357
    %v376 = vpack.c.b16 %v360, %v359
    %393 = vmatpush.bf16.msra.mxu0 %v368
    %394 = vmatpush.bf16.msra.mxu0 %v367
    %395 = vmatpush.bf16.msra.mxu0 %v366
    %396 = vmatpush.bf16.msra.mxu0 %v365
    %397 = vmatpush.bf16.msra.mxu0 %v364
    %398 = vmatpush.bf16.msra.mxu0 %v363
    %399 = vmatpush.bf16.msra.mxu0 %v362
    %400 = vmatpush.bf16.msra.mxu0 %v361
    %401 = vmatmul.bf16.gmra.mxu0 %v259
    %v402 = vpop.f32.mrf.mxu0
    %v403 = vadd.f32 %v295, %v402
    %v404 = vpop.f32.mrf.mxu0
    %405 = vdwg.mxu0
    %406 = vmatpush.bf16.msra.mxu0 %v376
    %407 = vmatpush.bf16.msra.mxu0 %v375
    %408 = vmatpush.bf16.msra.mxu0 %v374
    %409 = vmatpush.bf16.msra.mxu0 %v373
    %410 = vmatpush.bf16.msra.mxu0 %v372
    %411 = vmatpush.bf16.msra.mxu0 %v371
    %412 = vmatpush.bf16.msra.mxu0 %v370
    %413 = vmatpush.bf16.msra.mxu0 %v369
    %414 = vmatmul.bf16.gmra.mxu0 %v260
    %v415 = vpop.f32.mrf.mxu0
    %v416 = vadd.f32 %v403, %v415
    %v417 = vpop.f32.mrf.mxu0
    %418 = vdwg.mxu0
    %v419 = vtanh.pop %v416
    %420 = vst [vmem:[#allocation10] sm:$0xff] %v419
    // Predicated region
    $region46: #{tpu_custom_call.1} parent=1 // pred_check
      _
    $region47: #{tpu_custom_call.1} parent=1 // pred_check_branch
      %422 = sbr.rel (0) target = $region49
    $region48: #{tpu_custom_call.1} parent=1 // pred_region
      %424 = vsyncadd [#allocation4], 0
      %s426 = sshll.u32 [#allocation10], 4
      %s427 = int_to_ptr.vmem [resolvable:$true] %s426
      %s428 = sshll.u32 %s7, 4
      %s429 = int_to_ptr.hbm [resolvable:$true] %s428
      %431 = dma.vmem_to_hbm [thread:$0]  %s427, 128, %s429, [#allocation4]
    $region49: #{tpu_custom_call.1} parent=1 // pred_fallthru
      _
    // Predicated region
    $region50: #{tpu_custom_call.1} parent=1 // pred_check
      _
    $region51: #{tpu_custom_call.1} parent=1 // pred_check_branch
      %433 = sbr.rel (0) target = $region53
    $region52: #{tpu_custom_call.1} parent=1 // pred_region
      %435 = dma.done [#allocation4], 128
    $region53: #{tpu_custom_call.1} parent=1 // pred_fallthru
      _
    %436 = vsyncpa [#allocation3], 1
    %437 = vsyncpa [#allocation6], 1
    %438 = vsyncpa [#allocation9], 1
    %439 = vsyncpa [#allocation4], 1

</llo_original>
